<compile_context>
chip_gen: v7x
topology: tpu7x:2x2x1
jax: 0.10.0
libtpu: 0.0.40
codegen_flags: <defaults>
</compile_context>

<pallas_src>
import functools

import jax
import jax.numpy as jnp
from jax import lax
from jax.experimental import pallas as pl
from jax.experimental.pallas import tpu as pltpu

EPS = 1e-5
# Raised above the 32 MiB scoped default (perf review).  Tune per generation:
# v5e/v6e have 128 MiB physical VMEM, v7x only 64 MiB.
VMEM_LIMIT = 64 * 1024 * 1024


# ---------------- kernel 1: BN1 batch statistics ----------------

def _stats_kernel(x_ref, sum_ref, ssq_ref, *, tm, m_total):
    @pl.when(pl.program_id(0) == 0)
    def _init():
        sum_ref[...] = jnp.zeros_like(sum_ref)
        ssq_ref[...] = jnp.zeros_like(ssq_ref)

    x = x_ref[...]
    if m_total % tm != 0:          # static: mask only if a ragged tail exists
        rows = (lax.broadcasted_iota(jnp.int32, (tm, 1), 0)
                + pl.program_id(0) * tm)
        x = jnp.where(rows < m_total, x, 0.0)
    sum_ref[...] += jnp.sum(x, axis=0, keepdims=True)
    ssq_ref[...] += jnp.sum(x * x, axis=0, keepdims=True)


def batch_stats(x2d, tm=4096):
    M, C = x2d.shape
    tm = min(tm, M)
    return pl.pallas_call(
        functools.partial(_stats_kernel, tm=tm, m_total=M),
        out_shape=(jax.ShapeDtypeStruct((1, C), jnp.float32),
                   jax.ShapeDtypeStruct((1, C), jnp.float32)),
        grid=(pl.cdiv(M, tm),),
        in_specs=[pl.BlockSpec((tm, C), lambda i: (i, 0))],
        out_specs=(pl.BlockSpec((1, C), lambda i: (0, 0)),
                   pl.BlockSpec((1, C), lambda i: (0, 0))),
        compiler_params=pltpu.CompilerParams(
            dimension_semantics=("arbitrary",),
            vmem_limit_bytes=VMEM_LIMIT),
    )(x2d)


# ------- kernel 2: fused BN1-affine -> ReLU -> conv1(1x1x1) + BN2 stats -------

def _bn_relu_conv1_stats_kernel(x_ref, sc_ref, sh_ref, w_ref, b_ref,
                                h_ref, sum_ref, ssq_ref, *, tm, m_total):
    @pl.when(pl.program_id(0) == 0)
    def _init():
        sum_ref[...] = jnp.zeros_like(sum_ref)
        ssq_ref[...] = jnp.zeros_like(ssq_ref)

    a = jnp.maximum(x_ref[...] * sc_ref[...] + sh_ref[...], 0.0)
    h = jnp.dot(a, w_ref[...], preferred_element_type=jnp.float32) + b_ref[...]
    h_ref[...] = h.astype(h_ref.dtype)           # bf16 intermediate to HBM

    if m_total % tm != 0:
        rows = (lax.broadcasted_iota(jnp.int32, (tm, 1), 0)
                + pl.program_id(0) * tm)
        h = jnp.where(rows < m_total, h, 0.0)
    sum_ref[...] += jnp.sum(h, axis=0, keepdims=True)
    ssq_ref[...] += jnp.sum(h * h, axis=0, keepdims=True)


def bn_relu_conv1x1_stats(x2d, scale, shift, w_mat, bias, tm=4096):
    M, Cin = x2d.shape
    Cmid = w_mat.shape[1]
    tm = min(tm, M)
    return pl.pallas_call(
        functools.partial(_bn_relu_conv1_stats_kernel, tm=tm, m_total=M),
        out_shape=(jax.ShapeDtypeStruct((M, Cmid), jnp.bfloat16),
                   jax.ShapeDtypeStruct((1, Cmid), jnp.float32),
                   jax.ShapeDtypeStruct((1, Cmid), jnp.float32)),
        grid=(pl.cdiv(M, tm),),
        in_specs=[pl.BlockSpec((tm, Cin), lambda i: (i, 0)),
                  pl.BlockSpec((1, Cin), lambda i: (0, 0)),
                  pl.BlockSpec((1, Cin), lambda i: (0, 0)),
                  pl.BlockSpec((Cin, Cmid), lambda i: (0, 0)),
                  pl.BlockSpec((1, Cmid), lambda i: (0, 0))],
        out_specs=(pl.BlockSpec((tm, Cmid), lambda i: (i, 0)),
                   pl.BlockSpec((1, Cmid), lambda i: (0, 0)),
                   pl.BlockSpec((1, Cmid), lambda i: (0, 0))),
        compiler_params=pltpu.CompilerParams(
            dimension_semantics=("arbitrary",),
            vmem_limit_bytes=VMEM_LIMIT),
    )(x2d, scale, shift, w_mat, bias)


# -- kernel 3: fused BN2-affine -> ReLU -> conv2(3x3x3, pad=1) -> cat([out,x]) --

def _bn_relu_conv3_cat_kernel(h_hbm, x_ref, sc_ref, sh_ref, w_ref, b_ref,
                              o_ref, a3_ref, raw_ref, sem, *,
                              D, H, W, Cmid, Cin, Cout):
    n = pl.program_id(0)
    d = pl.program_id(1)
    HW = H * W
    base = n * D                                   # flat (n, depth) indexing
    zeros_plane = jnp.zeros((HW, Cmid), jnp.float32)

    def activate(h_bf16):                          # BN2 affine + ReLU (f32)
        return jnp.maximum(
            h_bf16.astype(jnp.float32) * sc_ref[...] + sh_ref[...], 0.0)

    # -------- sliding 3-plane buffer of activated depth planes ------------
    # a3_ref columns: [0:Cmid]=plane d-1, [Cmid:2Cmid]=plane d,
    #                 [2Cmid:3Cmid]=plane d+1 (padding planes are zero).
    @pl.when(d == 0)
    def _init():
        cp0 = pltpu.make_async_copy(h_hbm.at[base + 0], raw_ref.at[0],
                                    sem.at[0])
        cp0.start()
        if D > 1:
            cp1 = pltpu.make_async_copy(h_hbm.at[base + 1], raw_ref.at[1],
                                        sem.at[1])
            cp1.start()
        cp0.wait()
        a3_ref[:, 0:Cmid] = zeros_plane                       # plane -1 (pad)
        a3_ref[:, Cmid:2 * Cmid] = activate(raw_ref[0])       # plane 0
        if D > 1:
            cp1.wait()
            a3_ref[:, 2 * Cmid:3 * Cmid] = activate(raw_ref[1])  # plane 1
            if D > 2:                                   # prefetch plane 2
                pltpu.make_async_copy(h_hbm.at[base + 2], raw_ref.at[0],
                                      sem.at[0]).start()
        else:
            a3_ref[:, 2 * Cmid:3 * Cmid] = zeros_plane

    adv = d >= 1

    @pl.when(jnp.logical_and(adv, d <= D - 3))
    def _prefetch():                       # plane d+2, consumed next step
        sl = (d + 2) % 2
        pltpu.make_async_copy(h_hbm.at[base + d + 2], raw_ref.at[sl],
                              sem.at[sl]).start()

    @pl.when(adv)
    def _slide():                          # prev <- cur, cur <- next
        a3_ref[:, 0:2 * Cmid] = a3_ref[:, Cmid:3 * Cmid]

    @pl.when(jnp.logical_and(adv, d <= D - 2))
    def _consume_next():                   # plane d+1 (prefetched earlier)
        sl = (d + 1) % 2
        pltpu.make_async_copy(h_hbm.at[base], raw_ref.at[sl],
                              sem.at[sl]).wait()
        a3_ref[:, 2 * Cmid:3 * Cmid] = activate(raw_ref[sl])

    @pl.when(jnp.logical_and(adv, d == D - 1))
    def _pad_next():                       # plane D (pad)
        a3_ref[:, 2 * Cmid:3 * Cmid] = zeros_plane

    # ----- 3x3x3 conv: 9 (HW, 3*Cmid) x (3*Cmid, Cout) MXU matmuls --------
    row = lax.broadcasted_iota(jnp.int32, (HW, 1), 0)
    hh = row // W
    ww = row - hh * W
    a3 = a3_ref[...]
    acc = jnp.broadcast_to(b_ref[...], (HW, Cout)).astype(jnp.float32)
    for kh in range(3):
        for kw in range(3):
            oh, ow = kh - 1, kw - 1
            t = oh * W + ow
            xs = a3 if t == 0 else jnp.roll(a3, -t, axis=0)
            if not (oh == 0 and ow == 0):
                m = jnp.logical_and(
                    jnp.logical_and(hh + oh >= 0, hh + oh <= H - 1),
                    jnp.logical_and(ww + ow >= 0, ww + ow <= W - 1))
                xs = jnp.where(m, xs, 0.0)
            acc = acc + jnp.dot(xs.astype(jnp.bfloat16), w_ref[kh * 3 + kw],
                                preferred_element_type=jnp.float32)

    # channel-concat written directly (no in-kernel concatenate)
    o_ref[0, :, 0:Cout] = acc
    o_ref[0, :, Cout:Cout + Cin] = x_ref[0, :, :]


def bn_relu_conv3x3x3_cat(h3, x3, scale2, shift2, w2_r, b2, *, N, D, H, W):
    ND, HW, Cmid = h3.shape
    Cin = x3.shape[-1]
    Cout = w2_r.shape[-1]
    Ctot = Cout + Cin
    kernel = functools.partial(_bn_relu_conv3_cat_kernel,
                               D=D, H=H, W=W, Cmid=Cmid, Cin=Cin, Cout=Cout)
    # TODO(synk): for v7x-scale planes (HW*Cmid >> VMEM) add an HW row-tiling
    # axis with halo handling; full (HW, *) planes are kept here.
    return pl.pallas_call(
        kernel,
        out_shape=jax.ShapeDtypeStruct((ND, HW, Ctot), jnp.float32),
        grid_spec=pltpu.PrefetchScalarGridSpec(
            num_scalar_prefetch=0,
            grid=(N, D),
            in_specs=[
                pl.BlockSpec(memory_space=pl.ANY),            # h (manual DMA)
                pl.BlockSpec((1, HW, Cin), lambda n, d: (n * D + d, 0, 0)),
                pl.BlockSpec((1, Cmid), lambda n, d: (0, 0)),
                pl.BlockSpec((1, Cmid), lambda n, d: (0, 0)),
                pl.BlockSpec((9, 3 * Cmid, Cout),
                             lambda n, d: (0, 0, 0)),          # resident w
                pl.BlockSpec((1, Cout), lambda n, d: (0, 0)),
            ],
            out_specs=pl.BlockSpec((1, HW, Ctot),
                                   lambda n, d: (n * D + d, 0, 0)),
            scratch_shapes=[pltpu.VMEM((HW, 3 * Cmid), jnp.float32),
                            pltpu.VMEM((2, HW, Cmid), jnp.bfloat16),
                            pltpu.SemaphoreType.DMA((2,))]),
        compiler_params=pltpu.CompilerParams(
            dimension_semantics=("parallel", "arbitrary"),
            vmem_limit_bytes=VMEM_LIMIT),
    )(h3, x3, scale2, shift2, w2_r, b2)


# ---------------- module forward (glue in plain JAX) ----------------

def _fold_bn(gamma, beta, s, ssq, count):
    mean = s / count
    var = jnp.maximum(ssq / count - mean * mean, 0.0)
    scale = gamma.reshape(1, -1) / jnp.sqrt(var + EPS)
    shift = beta.reshape(1, -1) - mean * scale
    return scale, shift


def bottleneck_forward(x_ncdhw, params, tm=4096):
    N, Cin, D, H, W = x_ncdhw.shape
    M = N * D * H * W
    HW = H * W

    # TODO(synk): keep the surrounding model channels-last end-to-end so these
    # two XLA transposes (a full HBM round trip of the activation each) vanish.
    x_cl = jnp.transpose(x_ncdhw, (0, 2, 3, 4, 1)).astype(jnp.float32)
    x2d = x_cl.reshape(M, Cin)

    # --- BN1 batch stats ---
    s1, q1 = batch_stats(x2d, tm=tm)
    scale1, shift1 = _fold_bn(params["gamma1"], params["beta1"], s1, q1, M)

    # --- fused bn1 -> relu -> conv1 (1x1x1) + BN2 stats, bf16 intermediate ---
    w1 = params["w1"]                                   # (Cmid, Cin, 1, 1, 1)
    Cmid = w1.shape[0]
    w1_mat = w1.reshape(Cmid, Cin).T                    # (Cin, Cmid)
    h2d, s2, q2 = bn_relu_conv1x1_stats(
        x2d, scale1, shift1, w1_mat, params["b1"].reshape(1, Cmid), tm=tm)
    scale2, shift2 = _fold_bn(params["gamma2"], params["beta2"], s2, q2, M)

    # --- fused bn2 -> relu -> conv2 (3x3x3, pad=1) -> bias -> cat([out, x]) ---
    w2 = params["w2"]                                   # (Cout, Cmid, 3, 3, 3)
    Cout = w2.shape[0]
    # (tap = kh*3+kw, K = kd*Cmid + cmid, Cout), bf16, resident in VMEM
    w2_r = jnp.transpose(w2, (3, 4, 2, 1, 0)).reshape(9, 3 * Cmid, Cout)
    w2_r = w2_r.astype(jnp.bfloat16)
    h3 = h2d.reshape(N * D, HW, Cmid)
    x3 = x2d.reshape(N * D, HW, Cin)
    out3 = bn_relu_conv3x3x3_cat(h3, x3, scale2, shift2, w2_r,
                                 params["b2"].reshape(1, Cout),
                                 N=N, D=D, H=H, W=W)

    out_cl = out3.reshape(N, D, H, W, Cout + Cin)
    return jnp.transpose(out_cl, (0, 4, 1, 2, 3))       # back to NCDHW


# ---------------- pure-JAX reference ----------------

def reference_forward(x, params):
    def bn(t, gamma, beta):
        m = t.mean(axis=(0, 2, 3, 4), keepdims=True)
        v = ((t - m) ** 2).mean(axis=(0, 2, 3, 4), keepdims=True)
        return (t - m) / jnp.sqrt(v + EPS) * gamma.reshape(1, -1, 1, 1, 1) \
               + beta.reshape(1, -1, 1, 1, 1)

    dn = ("NCDHW", "OIDHW", "NCDHW")
    h = jnp.maximum(bn(x, params["gamma1"], params["beta1"]), 0.0)
    h = lax.conv_general_dilated(h, params["w1"], (1, 1, 1), "VALID",
                                 dimension_numbers=dn) \
        + params["b1"].reshape(1, -1, 1, 1, 1)
    h = jnp.maximum(bn(h, params["gamma2"], params["beta2"]), 0.0)
    out = lax.conv_general_dilated(h, params["w2"], (1, 1, 1),
                                   [(1, 1), (1, 1), (1, 1)],
                                   dimension_numbers=dn) \
        + params["b2"].reshape(1, -1, 1, 1, 1)
    return jnp.concatenate([out, x], axis=1)


if __name__ == "__main__":
    key = jax.random.PRNGKey(0)
    N, Cin, Cout = 2, 4, 4
    D = H = W = 8
    Cmid = 4 * Cout
    ks = jax.random.split(key, 9)
    x = jax.random.normal(ks[0], (N, Cin, D, H, W), jnp.float32)
    params = {
        "gamma1": 1.0 + 0.1 * jax.random.normal(ks[1], (Cin,), jnp.float32),
        "beta1": 0.1 * jax.random.normal(ks[2], (Cin,), jnp.float32),
        "w1": 0.5 * jax.random.normal(ks[3], (Cmid, Cin, 1, 1, 1), jnp.float32),
        "b1": 0.05 * jax.random.normal(ks[4], (Cmid,), jnp.float32),
        "gamma2": 1.0 + 0.1 * jax.random.normal(ks[5], (Cmid,), jnp.float32),
        "beta2": 0.1 * jax.random.normal(ks[6], (Cmid,), jnp.float32),
        "w2": 0.1 * jax.random.normal(ks[7], (Cout, Cmid, 3, 3, 3), jnp.float32),
        "b2": 0.1 * jax.random.normal(ks[8], (Cout,), jnp.float32),
    }

    out = jax.block_until_ready(bottleneck_forward(x, params))
    assert out.shape == (N, Cout + Cin, D, H, W), out.shape

    ref = jax.block_until_ready(reference_forward(x, params))
    # bf16 conv1-output intermediate + bf16 MXU operands in the 3x3x3 conv
    # => compare against the f32 reference at a correspondingly loose tolerance.
    assert jnp.allclose(out, ref, atol=5e-2, rtol=5e-2), \
        float(jnp.max(jnp.abs(out - ref)))
    print("KERNEL_OK")
</pallas_src>

<mosaic_0001>
module attributes {stable_mosaic.version = 11 : i64} {
  func.func @_stats_kernel(%arg0: i32, %arg1: memref<1024x4xf32, #tpu.memory_space<vmem>>, %arg2: memref<1x4xf32, #tpu.memory_space<vmem>>, %arg3: memref<1x4xf32, #tpu.memory_space<vmem>>) attributes {dimension_semantics = [#tpu.dimension_semantics<arbitrary>], iteration_bounds = array<i64: 1>, scalar_prefetch = 0 : i64, scratch_operands = 0 : i64, tpu.core_type = #tpu.core_type<tc>, window_params = [{transform_indices = @transform_0, window_bounds = array<i64: 1024, 4>}, {pipeline_mode = #tpu.pipeline_mode<synchronous>, transform_indices = @transform_1, window_bounds = array<i64: 1, 4>}, {pipeline_mode = #tpu.pipeline_mode<synchronous>, transform_indices = @transform_2, window_bounds = array<i64: 1, 4>}]} {
    %c0_i32 = arith.constant 0 : i32
    %0 = arith.cmpi eq, %arg0, %c0_i32 : i32
    %1 = arith.extui %0 : i1 to i32
    %c0_i32_0 = arith.constant 0 : i32
    %2 = arith.cmpi ne, %1, %c0_i32_0 : i32
    scf.if %2 {
      %cst_11 = arith.constant 0.000000e+00 : f32
      %15 = vector.broadcast %cst_11 : f32 to vector<1x4xf32>
      %c0_12 = arith.constant 0 : index
      %c0_13 = arith.constant 0 : index
      %16 = vector.load %arg2[%c0_12, %c0_13] : memref<1x4xf32, #tpu.memory_space<vmem>>, vector<1x4xf32>
      tpu.vector_store %arg2[%c0_12, %c0_13], %15 {strides = array<i32>} : memref<1x4xf32, #tpu.memory_space<vmem>>, vector<1x4xf32>,
      %cst_14 = arith.constant 0.000000e+00 : f32
      %17 = vector.broadcast %cst_14 : f32 to vector<1x4xf32>
      %c0_15 = arith.constant 0 : index
      %c0_16 = arith.constant 0 : index
      %18 = vector.load %arg3[%c0_15, %c0_16] : memref<1x4xf32, #tpu.memory_space<vmem>>, vector<1x4xf32>
      tpu.vector_store %arg3[%c0_15, %c0_16], %17 {strides = array<i32>} : memref<1x4xf32, #tpu.memory_space<vmem>>, vector<1x4xf32>,
    } else {
    }
    %c0 = arith.constant 0 : index
    %c0_1 = arith.constant 0 : index
    %3 = vector.load %arg1[%c0, %c0_1] : memref<1024x4xf32, #tpu.memory_space<vmem>>, vector<1024x4xf32>
    %c0_2 = arith.constant 0 : index
    %c0_3 = arith.constant 0 : index
    %4 = vector.load %arg2[%c0_2, %c0_3] : memref<1x4xf32, #tpu.memory_space<vmem>>, vector<1x4xf32>
    %cst = arith.constant dense<0.000000e+00> : vector<4xf32>
    %5 = vector.multi_reduction <add>, %3, %cst [0] : vector<1024x4xf32> to vector<4xf32>
    %6 = vector.shape_cast %5 : vector<4xf32> to vector<1x4xf32>
    %7 = arith.addf %4, %6 : vector<1x4xf32>
    %c0_4 = arith.constant 0 : index
    %c0_5 = arith.constant 0 : index
    %8 = vector.load %arg2[%c0_4, %c0_5] : memref<1x4xf32, #tpu.memory_space<vmem>>, vector<1x4xf32>
    tpu.vector_store %arg2[%c0_4, %c0_5], %7 {strides = array<i32>} : memref<1x4xf32, #tpu.memory_space<vmem>>, vector<1x4xf32>,
    %c0_6 = arith.constant 0 : index
    %c0_7 = arith.constant 0 : index
    %9 = vector.load %arg3[%c0_6, %c0_7] : memref<1x4xf32, #tpu.memory_space<vmem>>, vector<1x4xf32>
    %10 = arith.mulf %3, %3 : vector<1024x4xf32>
    %cst_8 = arith.constant dense<0.000000e+00> : vector<4xf32>
    %11 = vector.multi_reduction <add>, %10, %cst_8 [0] : vector<1024x4xf32> to vector<4xf32>
    %12 = vector.shape_cast %11 : vector<4xf32> to vector<1x4xf32>
    %13 = arith.addf %9, %12 : vector<1x4xf32>
    %c0_9 = arith.constant 0 : index
    %c0_10 = arith.constant 0 : index
    %14 = vector.load %arg3[%c0_9, %c0_10] : memref<1x4xf32, #tpu.memory_space<vmem>>, vector<1x4xf32>
    tpu.vector_store %arg3[%c0_9, %c0_10], %13 {strides = array<i32>} : memref<1x4xf32, #tpu.memory_space<vmem>>, vector<1x4xf32>,
    return
  }
  func.func @transform_0(%arg0: i32) -> (i32, i32) {
    %c0_i32 = arith.constant 0 : i32
    %c0_i32_0 = arith.constant 0 : i32
    return %arg0, %c0_i32 : i32, i32
  }
  func.func @transform_1(%arg0: i32) -> (i32, i32) {
    %c0_i32 = arith.constant 0 : i32
    %c0_i32_0 = arith.constant 0 : i32
    %c0_i32_1 = arith.constant 0 : i32
    return %c0_i32, %c0_i32_0 : i32, i32
  }
  func.func @transform_2(%arg0: i32) -> (i32, i32) {
    %c0_i32 = arith.constant 0 : i32
    %c0_i32_0 = arith.constant 0 : i32
    %c0_i32_1 = arith.constant 0 : i32
    return %c0_i32, %c0_i32_0 : i32, i32
  }
}

</mosaic_0001>

<llo_original>
// kernel: tpu_custom_call.1
$region0: #{tpu_custom_call.1}
  #allocation0 [shape = 'u32[]', space=smem, size = 0x4, offset = 0x4, fixed_abs, tag = 'smem constant byte address 0x4 - core index']
  #allocation1 [shape = 'u32[144,128]{1,0:T(1,128)}', space=vmem, size = 0x12000, scoped, tag = 'internal scratch']
  %s0 = inlined_call_operand.hbm [shape: f32[1024,4], index: 0, kind: input, shape index: {}]
  %s1 = inlined_call_operand.hbm [shape: f32[1,4], index: 1, kind: output, shape index: {0}]
  %s2 = inlined_call_operand.hbm [shape: f32[1,4], index: 2, kind: output, shape index: {1}]
  %3 = xla_tuple %s1, %s2
  %s4 = sld [smem:[#allocation0]]
  $region30: #{tpu_custom_call.1} parent=0
    _
  %s6 = ssub.s32 1, %s4
  %s7 = scalar_select 0, %s6, %s4
  $region1: #{tpu_custom_call.1} parent=0
    #allocation2 [shape = 'u8[524288]{0}', space=vmem, size = 0x80000, scoped, tag = 'input window, operand 0, single buffered']
    #allocation3 [shape = 's32[1]{0}', space=sflag, size = 0x4, scoped, tag = 'scoped memory for tpu_custom_call.1']
    #allocation4 [shape = 's32[1]{0}', space=sflag, size = 0x4, scoped, tag = 'scoped memory for tpu_custom_call.1']
    #allocation5 [shape = 'u8[512]{0}', space=vmem, size = 0x400, scoped, tag = 'output window, operand 0, single buffered']
    #allocation6 [shape = 'u8[512]{0}', space=vmem, size = 0x400, scoped, tag = 'output window, operand 1, single buffered']
    #allocation7 [shape = 's32[1]{0}', space=sflag, size = 0x4, scoped, tag = 'scoped memory for tpu_custom_call.1']
    %8 = vsyncpa [#allocation3], 0
    %9 = vsyncpa [#allocation4], 0
    %10 = vsyncpa [#allocation7], 0
    // Predicated region
    $region2: #{tpu_custom_call.1} parent=1 // pred_check
      _
    $region3: #{tpu_custom_call.1} parent=1 // pred_check_branch
      %12 = sbr.rel (0) target = $region5
    $region4: #{tpu_custom_call.1} parent=1 // pred_region
      %s14 = ssub.s32 16384, 16384
      %15 = vsyncadd [#allocation3], %s14
      %s16 = sshll.u32 [#allocation2], 4
      %s17 = int_to_ptr.vmem [resolvable:$true] %s16
      %22 = dma.hbm_to_vmem [thread:$0]  %s0, 16384, %s17, [#allocation3], 128, 128, 8
    $region5: #{tpu_custom_call.1} parent=1 // pred_fallthru
      _
    // Predicated region
    $region6: #{tpu_custom_call.1} parent=1 // pred_check
      _
    $region7: #{tpu_custom_call.1} parent=1 // pred_check_branch
      %24 = sbr.rel (0) target = $region9
    $region8: #{tpu_custom_call.1} parent=1 // pred_region
      %25 = dma.done [#allocation3], 16384
    $region9: #{tpu_custom_call.1} parent=1 // pred_fallthru
      _
    %p26 = scmp.eq.s32.totalorder 0, 0
    // Predicated region
    $region10: #{tpu_custom_call.1} parent=1 // pred_check
      %p27 = pneg %p26
    $region11: #{tpu_custom_call.1} parent=1 // pred_check_branch
      %29 = sbr.rel (%p27) target = $region13
    $region12: #{tpu_custom_call.1} parent=1 // pred_region
      %vm30 = vcmask 24576
      %31 = vst.msk [vmem:[#allocation5] sm:$0x1] %vm30, 0.0
      %32 = vst.msk [vmem:[#allocation6] sm:$0x1] %vm30, 0.0
    $region13: #{tpu_custom_call.1} parent=1 // pred_fallthru
      _
    %v33 = vld [vmem:[#allocation2] sm:$0xff]
    %v34 = vld [vmem:[#allocation2 + $0x8] sm:$0xff]
    %v35 = vld [vmem:[#allocation2 + $0x10] sm:$0xff]
    %v36 = vld [vmem:[#allocation2 + $0x18] sm:$0xff]
    %v37 = vld [vmem:[#allocation2 + $0x20] sm:$0xff]
    %v38 = vld [vmem:[#allocation2 + $0x28] sm:$0xff]
    %v39 = vld [vmem:[#allocation2 + $0x30] sm:$0xff]
    %v40 = vld [vmem:[#allocation2 + $0x38] sm:$0xff]
    %v41 = vld [vmem:[#allocation2 + $0x40] sm:$0xff]
    %v42 = vld [vmem:[#allocation2 + $0x48] sm:$0xff]
    %v43 = vld [vmem:[#allocation2 + $0x50] sm:$0xff]
    %v44 = vld [vmem:[#allocation2 + $0x58] sm:$0xff]
    %v45 = vld [vmem:[#allocation2 + $0x60] sm:$0xff]
    %v46 = vld [vmem:[#allocation2 + $0x68] sm:$0xff]
    %v47 = vld [vmem:[#allocation2 + $0x70] sm:$0xff]
    %v48 = vld [vmem:[#allocation2 + $0x78] sm:$0xff]
    %v49 = vld [vmem:[#allocation2 + $0x80] sm:$0xff]
    %v50 = vld [vmem:[#allocation2 + $0x88] sm:$0xff]
    %v51 = vld [vmem:[#allocation2 + $0x90] sm:$0xff]
    %v52 = vld [vmem:[#allocation2 + $0x98] sm:$0xff]
    %v53 = vld [vmem:[#allocation2 + $0xa0] sm:$0xff]
    %v54 = vld [vmem:[#allocation2 + $0xa8] sm:$0xff]
    %v55 = vld [vmem:[#allocation2 + $0xb0] sm:$0xff]
    %v56 = vld [vmem:[#allocation2 + $0xb8] sm:$0xff]
    %v57 = vld [vmem:[#allocation2 + $0xc0] sm:$0xff]
    %v58 = vld [vmem:[#allocation2 + $0xc8] sm:$0xff]
    %v59 = vld [vmem:[#allocation2 + $0xd0] sm:$0xff]
    %v60 = vld [vmem:[#allocation2 + $0xd8] sm:$0xff]
    %v61 = vld [vmem:[#allocation2 + $0xe0] sm:$0xff]
    %v62 = vld [vmem:[#allocation2 + $0xe8] sm:$0xff]
    %v63 = vld [vmem:[#allocation2 + $0xf0] sm:$0xff]
    %v64 = vld [vmem:[#allocation2 + $0xf8] sm:$0xff]
    %v65 = vld [vmem:[#allocation2 + $0x100] sm:$0xff]
    %v66 = vld [vmem:[#allocation2 + $0x108] sm:$0xff]
    %v67 = vld [vmem:[#allocation2 + $0x110] sm:$0xff]
    %v68 = vld [vmem:[#allocation2 + $0x118] sm:$0xff]
    %v69 = vld [vmem:[#allocation2 + $0x120] sm:$0xff]
    %v70 = vld [vmem:[#allocation2 + $0x128] sm:$0xff]
    %v71 = vld [vmem:[#allocation2 + $0x130] sm:$0xff]
    %v72 = vld [vmem:[#allocation2 + $0x138] sm:$0xff]
    %v73 = vld [vmem:[#allocation2 + $0x140] sm:$0xff]
    %v74 = vld [vmem:[#allocation2 + $0x148] sm:$0xff]
    %v75 = vld [vmem:[#allocation2 + $0x150] sm:$0xff]
    %v76 = vld [vmem:[#allocation2 + $0x158] sm:$0xff]
    %v77 = vld [vmem:[#allocation2 + $0x160] sm:$0xff]
    %v78 = vld [vmem:[#allocation2 + $0x168] sm:$0xff]
    %v79 = vld [vmem:[#allocation2 + $0x170] sm:$0xff]
    %v80 = vld [vmem:[#allocation2 + $0x178] sm:$0xff]
    %v81 = vld [vmem:[#allocation2 + $0x180] sm:$0xff]
    %v82 = vld [vmem:[#allocation2 + $0x188] sm:$0xff]
    %v83 = vld [vmem:[#allocation2 + $0x190] sm:$0xff]
    %v84 = vld [vmem:[#allocation2 + $0x198] sm:$0xff]
    %v85 = vld [vmem:[#allocation2 + $0x1a0] sm:$0xff]
    %v86 = vld [vmem:[#allocation2 + $0x1a8] sm:$0xff]
    %v87 = vld [vmem:[#allocation2 + $0x1b0] sm:$0xff]
    %v88 = vld [vmem:[#allocation2 + $0x1b8] sm:$0xff]
    %v89 = vld [vmem:[#allocation2 + $0x1c0] sm:$0xff]
    %v90 = vld [vmem:[#allocation2 + $0x1c8] sm:$0xff]
    %v91 = vld [vmem:[#allocation2 + $0x1d0] sm:$0xff]
    %v92 = vld [vmem:[#allocation2 + $0x1d8] sm:$0xff]
    %v93 = vld [vmem:[#allocation2 + $0x1e0] sm:$0xff]
    %v94 = vld [vmem:[#allocation2 + $0x1e8] sm:$0xff]
    %v95 = vld [vmem:[#allocation2 + $0x1f0] sm:$0xff]
    %v96 = vld [vmem:[#allocation2 + $0x1f8] sm:$0xff]
    %v97 = vld [vmem:[#allocation2 + $0x200] sm:$0xff]
    %v98 = vld [vmem:[#allocation2 + $0x208] sm:$0xff]
    %v99 = vld [vmem:[#allocation2 + $0x210] sm:$0xff]
    %v100 = vld [vmem:[#allocation2 + $0x218] sm:$0xff]
    %v101 = vld [vmem:[#allocation2 + $0x220] sm:$0xff]
    %v102 = vld [vmem:[#allocation2 + $0x228] sm:$0xff]
    %v103 = vld [vmem:[#allocation2 + $0x230] sm:$0xff]
    %v104 = vld [vmem:[#allocation2 + $0x238] sm:$0xff]
    %v105 = vld [vmem:[#allocation2 + $0x240] sm:$0xff]
    %v106 = vld [vmem:[#allocation2 + $0x248] sm:$0xff]
    %v107 = vld [vmem:[#allocation2 + $0x250] sm:$0xff]
    %v108 = vld [vmem:[#allocation2 + $0x258] sm:$0xff]
    %v109 = vld [vmem:[#allocation2 + $0x260] sm:$0xff]
    %v110 = vld [vmem:[#allocation2 + $0x268] sm:$0xff]
    %v111 = vld [vmem:[#allocation2 + $0x270] sm:$0xff]
    %v112 = vld [vmem:[#allocation2 + $0x278] sm:$0xff]
    %v113 = vld [vmem:[#allocation2 + $0x280] sm:$0xff]
    %v114 = vld [vmem:[#allocation2 + $0x288] sm:$0xff]
    %v115 = vld [vmem:[#allocation2 + $0x290] sm:$0xff]
    %v116 = vld [vmem:[#allocation2 + $0x298] sm:$0xff]
    %v117 = vld [vmem:[#allocation2 + $0x2a0] sm:$0xff]
    %v118 = vld [vmem:[#allocation2 + $0x2a8] sm:$0xff]
    %v119 = vld [vmem:[#allocation2 + $0x2b0] sm:$0xff]
    %v120 = vld [vmem:[#allocation2 + $0x2b8] sm:$0xff]
    %v121 = vld [vmem:[#allocation2 + $0x2c0] sm:$0xff]
    %v122 = vld [vmem:[#allocation2 + $0x2c8] sm:$0xff]
    %v123 = vld [vmem:[#allocation2 + $0x2d0] sm:$0xff]
    %v124 = vld [vmem:[#allocation2 + $0x2d8] sm:$0xff]
    %v125 = vld [vmem:[#allocation2 + $0x2e0] sm:$0xff]
    %v126 = vld [vmem:[#allocation2 + $0x2e8] sm:$0xff]
    %v127 = vld [vmem:[#allocation2 + $0x2f0] sm:$0xff]
    %v128 = vld [vmem:[#allocation2 + $0x2f8] sm:$0xff]
    %v129 = vld [vmem:[#allocation2 + $0x300] sm:$0xff]
    %v130 = vld [vmem:[#allocation2 + $0x308] sm:$0xff]
    %v131 = vld [vmem:[#allocation2 + $0x310] sm:$0xff]
    %v132 = vld [vmem:[#allocation2 + $0x318] sm:$0xff]
    %v133 = vld [vmem:[#allocation2 + $0x320] sm:$0xff]
    %v134 = vld [vmem:[#allocation2 + $0x328] sm:$0xff]
    %v135 = vld [vmem:[#allocation2 + $0x330] sm:$0xff]
    %v136 = vld [vmem:[#allocation2 + $0x338] sm:$0xff]
    %v137 = vld [vmem:[#allocation2 + $0x340] sm:$0xff]
    %v138 = vld [vmem:[#allocation2 + $0x348] sm:$0xff]
    %v139 = vld [vmem:[#allocation2 + $0x350] sm:$0xff]
    %v140 = vld [vmem:[#allocation2 + $0x358] sm:$0xff]
    %v141 = vld [vmem:[#allocation2 + $0x360] sm:$0xff]
    %v142 = vld [vmem:[#allocation2 + $0x368] sm:$0xff]
    %v143 = vld [vmem:[#allocation2 + $0x370] sm:$0xff]
    %v144 = vld [vmem:[#allocation2 + $0x378] sm:$0xff]
    %v145 = vld [vmem:[#allocation2 + $0x380] sm:$0xff]
    %v146 = vld [vmem:[#allocation2 + $0x388] sm:$0xff]
    %v147 = vld [vmem:[#allocation2 + $0x390] sm:$0xff]
    %v148 = vld [vmem:[#allocation2 + $0x398] sm:$0xff]
    %v149 = vld [vmem:[#allocation2 + $0x3a0] sm:$0xff]
    %v150 = vld [vmem:[#allocation2 + $0x3a8] sm:$0xff]
    %v151 = vld [vmem:[#allocation2 + $0x3b0] sm:$0xff]
    %v152 = vld [vmem:[#allocation2 + $0x3b8] sm:$0xff]
    %v153 = vld [vmem:[#allocation2 + $0x3c0] sm:$0xff]
    %v154 = vld [vmem:[#allocation2 + $0x3c8] sm:$0xff]
    %v155 = vld [vmem:[#allocation2 + $0x3d0] sm:$0xff]
    %v156 = vld [vmem:[#allocation2 + $0x3d8] sm:$0xff]
    %v157 = vld [vmem:[#allocation2 + $0x3e0] sm:$0xff]
    %v158 = vld [vmem:[#allocation2 + $0x3e8] sm:$0xff]
    %v159 = vld [vmem:[#allocation2 + $0x3f0] sm:$0xff]
    %v160 = vld [vmem:[#allocation2 + $0x3f8] sm:$0xff]
    %v161 = vld [vmem:[#allocation5] sm:$0x1]
    %vm162 = vcmask 31744
    %v163 = vsel %vm162, %v33, 0.0
    %v164 = vsel %vm162, %v34, 0.0
    %v165 = vadd.f32 %v163, %v164
    %v166 = vsel %vm162, %v35, 0.0
    %v167 = vadd.f32 %v165, %v166
    %v168 = vsel %vm162, %v36, 0.0
    %v169 = vadd.f32 %v167, %v168
    %v170 = vsel %vm162, %v37, 0.0
    %v171 = vadd.f32 %v169, %v170
    %v172 = vsel %vm162, %v38, 0.0
    %v173 = vadd.f32 %v171, %v172
    %v174 = vsel %vm162, %v39, 0.0
    %v175 = vadd.f32 %v173, %v174
    %v176 = vsel %vm162, %v40, 0.0
    %v177 = vadd.f32 %v175, %v176
    %v178 = vsel %vm162, %v41, 0.0
    %v179 = vadd.f32 %v177, %v178
    %v180 = vsel %vm162, %v42, 0.0
    %v181 = vadd.f32 %v179, %v180
    %v182 = vsel %vm162, %v43, 0.0
    %v183 = vadd.f32 %v181, %v182
    %v184 = vsel %vm162, %v44, 0.0
    %v185 = vadd.f32 %v183, %v184
    %v186 = vsel %vm162, %v45, 0.0
    %v187 = vadd.f32 %v185, %v186
    %v188 = vsel %vm162, %v46, 0.0
    %v189 = vadd.f32 %v187, %v188
    %v190 = vsel %vm162, %v47, 0.0
    %v191 = vadd.f32 %v189, %v190
    %v192 = vsel %vm162, %v48, 0.0
    %v193 = vadd.f32 %v191, %v192
    %v194 = vsel %vm162, %v49, 0.0
    %v195 = vadd.f32 %v193, %v194
    %v196 = vsel %vm162, %v50, 0.0
    %v197 = vadd.f32 %v195, %v196
    %v198 = vsel %vm162, %v51, 0.0
    %v199 = vadd.f32 %v197, %v198
    %v200 = vsel %vm162, %v52, 0.0
    %v201 = vadd.f32 %v199, %v200
    %v202 = vsel %vm162, %v53, 0.0
    %v203 = vadd.f32 %v201, %v202
    %v204 = vsel %vm162, %v54, 0.0
    %v205 = vadd.f32 %v203, %v204
    %v206 = vsel %vm162, %v55, 0.0
    %v207 = vadd.f32 %v205, %v206
    %v208 = vsel %vm162, %v56, 0.0
    %v209 = vadd.f32 %v207, %v208
    %v210 = vsel %vm162, %v57, 0.0
    %v211 = vadd.f32 %v209, %v210
    %v212 = vsel %vm162, %v58, 0.0
    %v213 = vadd.f32 %v211, %v212
    %v214 = vsel %vm162, %v59, 0.0
    %v215 = vadd.f32 %v213, %v214
    %v216 = vsel %vm162, %v60, 0.0
    %v217 = vadd.f32 %v215, %v216
    %v218 = vsel %vm162, %v61, 0.0
    %v219 = vadd.f32 %v217, %v218
    %v220 = vsel %vm162, %v62, 0.0
    %v221 = vadd.f32 %v219, %v220
    %v222 = vsel %vm162, %v63, 0.0
    %v223 = vadd.f32 %v221, %v222
    %v224 = vsel %vm162, %v64, 0.0
    %v225 = vadd.f32 %v223, %v224
    %v226 = vsel %vm162, %v65, 0.0
    %v227 = vadd.f32 %v225, %v226
    %v228 = vsel %vm162, %v66, 0.0
    %v229 = vadd.f32 %v227, %v228
    %v230 = vsel %vm162, %v67, 0.0
    %v231 = vadd.f32 %v229, %v230
    %v232 = vsel %vm162, %v68, 0.0
    %v233 = vadd.f32 %v231, %v232
    %v234 = vsel %vm162, %v69, 0.0
    %v235 = vadd.f32 %v233, %v234
    %v236 = vsel %vm162, %v70, 0.0
    %v237 = vadd.f32 %v235, %v236
    %v238 = vsel %vm162, %v71, 0.0
    %v239 = vadd.f32 %v237, %v238
    %v240 = vsel %vm162, %v72, 0.0
    %v241 = vadd.f32 %v239, %v240
    %v242 = vsel %vm162, %v73, 0.0
    %v243 = vadd.f32 %v241, %v242
    %v244 = vsel %vm162, %v74, 0.0
    %v245 = vadd.f32 %v243, %v244
    %v246 = vsel %vm162, %v75, 0.0
    %v247 = vadd.f32 %v245, %v246
    %v248 = vsel %vm162, %v76, 0.0
    %v249 = vadd.f32 %v247, %v248
    %v250 = vsel %vm162, %v77, 0.0
    %v251 = vadd.f32 %v249, %v250
    %v252 = vsel %vm162, %v78, 0.0
    %v253 = vadd.f32 %v251, %v252
    %v254 = vsel %vm162, %v79, 0.0
    %v255 = vadd.f32 %v253, %v254
    %v256 = vsel %vm162, %v80, 0.0
    %v257 = vadd.f32 %v255, %v256
    %v258 = vsel %vm162, %v81, 0.0
    %v259 = vadd.f32 %v257, %v258
    %v260 = vsel %vm162, %v82, 0.0
    %v261 = vadd.f32 %v259, %v260
    %v262 = vsel %vm162, %v83, 0.0
    %v263 = vadd.f32 %v261, %v262
    %v264 = vsel %vm162, %v84, 0.0
    %v265 = vadd.f32 %v263, %v264
    %v266 = vsel %vm162, %v85, 0.0
    %v267 = vadd.f32 %v265, %v266
    %v268 = vsel %vm162, %v86, 0.0
    %v269 = vadd.f32 %v267, %v268
    %v270 = vsel %vm162, %v87, 0.0
    %v271 = vadd.f32 %v269, %v270
    %v272 = vsel %vm162, %v88, 0.0
    %v273 = vadd.f32 %v271, %v272
    %v274 = vsel %vm162, %v89, 0.0
    %v275 = vadd.f32 %v273, %v274
    %v276 = vsel %vm162, %v90, 0.0
    %v277 = vadd.f32 %v275, %v276
    %v278 = vsel %vm162, %v91, 0.0
    %v279 = vadd.f32 %v277, %v278
    %v280 = vsel %vm162, %v92, 0.0
    %v281 = vadd.f32 %v279, %v280
    %v282 = vsel %vm162, %v93, 0.0
    %v283 = vadd.f32 %v281, %v282
    %v284 = vsel %vm162, %v94, 0.0
    %v285 = vadd.f32 %v283, %v284
    %v286 = vsel %vm162, %v95, 0.0
    %v287 = vadd.f32 %v285, %v286
    %v288 = vsel %vm162, %v96, 0.0
    %v289 = vadd.f32 %v287, %v288
    %v290 = vsel %vm162, %v97, 0.0
    %v291 = vadd.f32 %v289, %v290
    %v292 = vsel %vm162, %v98, 0.0
    %v293 = vadd.f32 %v291, %v292
    %v294 = vsel %vm162, %v99, 0.0
    %v295 = vadd.f32 %v293, %v294
    %v296 = vsel %vm162, %v100, 0.0
    %v297 = vadd.f32 %v295, %v296
    %v298 = vsel %vm162, %v101, 0.0
    %v299 = vadd.f32 %v297, %v298
    %v300 = vsel %vm162, %v102, 0.0
    %v301 = vadd.f32 %v299, %v300
    %v302 = vsel %vm162, %v103, 0.0
    %v303 = vadd.f32 %v301, %v302
    %v304 = vsel %vm162, %v104, 0.0
    %v305 = vadd.f32 %v303, %v304
    %v306 = vsel %vm162, %v105, 0.0
    %v307 = vadd.f32 %v305, %v306
    %v308 = vsel %vm162, %v106, 0.0
    %v309 = vadd.f32 %v307, %v308
    %v310 = vsel %vm162, %v107, 0.0
    %v311 = vadd.f32 %v309, %v310
    %v312 = vsel %vm162, %v108, 0.0
    %v313 = vadd.f32 %v311, %v312
    %v314 = vsel %vm162, %v109, 0.0
    %v315 = vadd.f32 %v313, %v314
    %v316 = vsel %vm162, %v110, 0.0
    %v317 = vadd.f32 %v315, %v316
    %v318 = vsel %vm162, %v111, 0.0
    %v319 = vadd.f32 %v317, %v318
    %v320 = vsel %vm162, %v112, 0.0
    %v321 = vadd.f32 %v319, %v320
    %v322 = vsel %vm162, %v113, 0.0
    %v323 = vadd.f32 %v321, %v322
    %v324 = vsel %vm162, %v114, 0.0
    %v325 = vadd.f32 %v323, %v324
    %v326 = vsel %vm162, %v115, 0.0
    %v327 = vadd.f32 %v325, %v326
    %v328 = vsel %vm162, %v116, 0.0
    %v329 = vadd.f32 %v327, %v328
    %v330 = vsel %vm162, %v117, 0.0
    %v331 = vadd.f32 %v329, %v330
    %v332 = vsel %vm162, %v118, 0.0
    %v333 = vadd.f32 %v331, %v332
    %v334 = vsel %vm162, %v119, 0.0
    %v335 = vadd.f32 %v333, %v334
    %v336 = vsel %vm162, %v120, 0.0
    %v337 = vadd.f32 %v335, %v336
    %v338 = vsel %vm162, %v121, 0.0
    %v339 = vadd.f32 %v337, %v338
    %v340 = vsel %vm162, %v122, 0.0
    %v341 = vadd.f32 %v339, %v340
    %v342 = vsel %vm162, %v123, 0.0
    %v343 = vadd.f32 %v341, %v342
    %v344 = vsel %vm162, %v124, 0.0
    %v345 = vadd.f32 %v343, %v344
    %v346 = vsel %vm162, %v125, 0.0
    %v347 = vadd.f32 %v345, %v346
    %v348 = vsel %vm162, %v126, 0.0
    %v349 = vadd.f32 %v347, %v348
    %v350 = vsel %vm162, %v127, 0.0
    %v351 = vadd.f32 %v349, %v350
    %v352 = vsel %vm162, %v128, 0.0
    %v353 = vadd.f32 %v351, %v352
    %v354 = vsel %vm162, %v129, 0.0
    %v355 = vadd.f32 %v353, %v354
    %v356 = vsel %vm162, %v130, 0.0
    %v357 = vadd.f32 %v355, %v356
    %v358 = vsel %vm162, %v131, 0.0
    %v359 = vadd.f32 %v357, %v358
    %v360 = vsel %vm162, %v132, 0.0
    %v361 = vadd.f32 %v359, %v360
    %v362 = vsel %vm162, %v133, 0.0
    %v363 = vadd.f32 %v361, %v362
    %v364 = vsel %vm162, %v134, 0.0
    %v365 = vadd.f32 %v363, %v364
    %v366 = vsel %vm162, %v135, 0.0
    %v367 = vadd.f32 %v365, %v366
    %v368 = vsel %vm162, %v136, 0.0
    %v369 = vadd.f32 %v367, %v368
    %v370 = vsel %vm162, %v137, 0.0
    %v371 = vadd.f32 %v369, %v370
    %v372 = vsel %vm162, %v138, 0.0
    %v373 = vadd.f32 %v371, %v372
    %v374 = vsel %vm162, %v139, 0.0
    %v375 = vadd.f32 %v373, %v374
    %v376 = vsel %vm162, %v140, 0.0
    %v377 = vadd.f32 %v375, %v376
    %v378 = vsel %vm162, %v141, 0.0
    %v379 = vadd.f32 %v377, %v378
    %v380 = vsel %vm162, %v142, 0.0
    %v381 = vadd.f32 %v379, %v380
    %v382 = vsel %vm162, %v143, 0.0
    %v383 = vadd.f32 %v381, %v382
    %v384 = vsel %vm162, %v144, 0.0
    %v385 = vadd.f32 %v383, %v384
    %v386 = vsel %vm162, %v145, 0.0
    %v387 = vadd.f32 %v385, %v386
    %v388 = vsel %vm162, %v146, 0.0
    %v389 = vadd.f32 %v387, %v388
    %v390 = vsel %vm162, %v147, 0.0
    %v391 = vadd.f32 %v389, %v390
    %v392 = vsel %vm162, %v148, 0.0
    %v393 = vadd.f32 %v391, %v392
    %v394 = vsel %vm162, %v149, 0.0
    %v395 = vadd.f32 %v393, %v394
    %v396 = vsel %vm162, %v150, 0.0
    %v397 = vadd.f32 %v395, %v396
    %v398 = vsel %vm162, %v151, 0.0
    %v399 = vadd.f32 %v397, %v398
    %v400 = vsel %vm162, %v152, 0.0
    %v401 = vadd.f32 %v399, %v400
    %v402 = vsel %vm162, %v153, 0.0
    %v403 = vadd.f32 %v401, %v402
    %v404 = vsel %vm162, %v154, 0.0
    %v405 = vadd.f32 %v403, %v404
    %v406 = vsel %vm162, %v155, 0.0
    %v407 = vadd.f32 %v405, %v406
    %v408 = vsel %vm162, %v156, 0.0
    %v409 = vadd.f32 %v407, %v408
    %v410 = vsel %vm162, %v157, 0.0
    %v411 = vadd.f32 %v409, %v410
    %v412 = vsel %vm162, %v158, 0.0
    %v413 = vadd.f32 %v411, %v412
    %v414 = vsel %vm162, %v159, 0.0
    %v415 = vadd.f32 %v413, %v414
    %v416 = vsel %vm162, %v160, 0.0
    %v417 = vadd.f32 %v415, %v416
    %v418 = vrot.slane %v417, 4
    %v419 = vadd.f32 %v417, %v418
    %v420 = vrot.slane %v419, 2
    %v421 = vadd.f32 %v419, %v420
    %v422 = vrot.slane %v421, 1
    %v423 = vadd.f32 %v421, %v422
    %v424 = vadd.f32 %v161, %v423
    %vm425 = vcmask 24576
    %426 = vst.msk [vmem:[#allocation5] sm:$0x1] %vm425, %v424
    %v427 = vld [vmem:[#allocation6] sm:$0x1]
    %v428 = vmul.f32 %v33, %v33
    %v429 = vmul.f32 %v34, %v34
    %v430 = vmul.f32 %v35, %v35
    %v431 = vmul.f32 %v36, %v36
    %v432 = vmul.f32 %v37, %v37
    %v433 = vmul.f32 %v38, %v38
    %v434 = vmul.f32 %v39, %v39
    %v435 = vmul.f32 %v40, %v40
    %v436 = vmul.f32 %v41, %v41
    %v437 = vmul.f32 %v42, %v42
    %v438 = vmul.f32 %v43, %v43
    %v439 = vmul.f32 %v44, %v44
    %v440 = vmul.f32 %v45, %v45
    %v441 = vmul.f32 %v46, %v46
    %v442 = vmul.f32 %v47, %v47
    %v443 = vmul.f32 %v48, %v48
    %v444 = vmul.f32 %v49, %v49
    %v445 = vmul.f32 %v50, %v50
    %v446 = vmul.f32 %v51, %v51
    %v447 = vmul.f32 %v52, %v52
    %v448 = vmul.f32 %v53, %v53
    %v449 = vmul.f32 %v54, %v54
    %v450 = vmul.f32 %v55, %v55
    %v451 = vmul.f32 %v56, %v56
    %v452 = vmul.f32 %v57, %v57
    %v453 = vmul.f32 %v58, %v58
    %v454 = vmul.f32 %v59, %v59
    %v455 = vmul.f32 %v60, %v60
    %v456 = vmul.f32 %v61, %v61
    %v457 = vmul.f32 %v62, %v62
    %v458 = vmul.f32 %v63, %v63
    %v459 = vmul.f32 %v64, %v64
    %v460 = vmul.f32 %v65, %v65
    %v461 = vmul.f32 %v66, %v66
    %v462 = vmul.f32 %v67, %v67
    %v463 = vmul.f32 %v68, %v68
    %v464 = vmul.f32 %v69, %v69
    %v465 = vmul.f32 %v70, %v70
    %v466 = vmul.f32 %v71, %v71
    %v467 = vmul.f32 %v72, %v72
    %v468 = vmul.f32 %v73, %v73
    %v469 = vmul.f32 %v74, %v74
    %v470 = vmul.f32 %v75, %v75
    %v471 = vmul.f32 %v76, %v76
    %v472 = vmul.f32 %v77, %v77
    %v473 = vmul.f32 %v78, %v78
    %v474 = vmul.f32 %v79, %v79
    %v475 = vmul.f32 %v80, %v80
    %v476 = vmul.f32 %v81, %v81
    %v477 = vmul.f32 %v82, %v82
    %v478 = vmul.f32 %v83, %v83
    %v479 = vmul.f32 %v84, %v84
    %v480 = vmul.f32 %v85, %v85
    %v481 = vmul.f32 %v86, %v86
    %v482 = vmul.f32 %v87, %v87
    %v483 = vmul.f32 %v88, %v88
    %v484 = vmul.f32 %v89, %v89
    %v485 = vmul.f32 %v90, %v90
    %v486 = vmul.f32 %v91, %v91
    %v487 = vmul.f32 %v92, %v92
    %v488 = vmul.f32 %v93, %v93
    %v489 = vmul.f32 %v94, %v94
    %v490 = vmul.f32 %v95, %v95
    %v491 = vmul.f32 %v96, %v96
    %v492 = vmul.f32 %v97, %v97
    %v493 = vmul.f32 %v98, %v98
    %v494 = vmul.f32 %v99, %v99
    %v495 = vmul.f32 %v100, %v100
    %v496 = vmul.f32 %v101, %v101
    %v497 = vmul.f32 %v102, %v102
    %v498 = vmul.f32 %v103, %v103
    %v499 = vmul.f32 %v104, %v104
    %v500 = vmul.f32 %v105, %v105
    %v501 = vmul.f32 %v106, %v106
    %v502 = vmul.f32 %v107, %v107
    %v503 = vmul.f32 %v108, %v108
    %v504 = vmul.f32 %v109, %v109
    %v505 = vmul.f32 %v110, %v110
    %v506 = vmul.f32 %v111, %v111
    %v507 = vmul.f32 %v112, %v112
    %v508 = vmul.f32 %v113, %v113
    %v509 = vmul.f32 %v114, %v114
    %v510 = vmul.f32 %v115, %v115
    %v511 = vmul.f32 %v116, %v116
    %v512 = vmul.f32 %v117, %v117
    %v513 = vmul.f32 %v118, %v118
    %v514 = vmul.f32 %v119, %v119
    %v515 = vmul.f32 %v120, %v120
    %v516 = vmul.f32 %v121, %v121
    %v517 = vmul.f32 %v122, %v122
    %v518 = vmul.f32 %v123, %v123
    %v519 = vmul.f32 %v124, %v124
    %v520 = vmul.f32 %v125, %v125
    %v521 = vmul.f32 %v126, %v126
    %v522 = vmul.f32 %v127, %v127
    %v523 = vmul.f32 %v128, %v128
    %v524 = vmul.f32 %v129, %v129
    %v525 = vmul.f32 %v130, %v130
    %v526 = vmul.f32 %v131, %v131
    %v527 = vmul.f32 %v132, %v132
    %v528 = vmul.f32 %v133, %v133
    %v529 = vmul.f32 %v134, %v134
    %v530 = vmul.f32 %v135, %v135
    %v531 = vmul.f32 %v136, %v136
    %v532 = vmul.f32 %v137, %v137
    %v533 = vmul.f32 %v138, %v138
    %v534 = vmul.f32 %v139, %v139
    %v535 = vmul.f32 %v140, %v140
    %v536 = vmul.f32 %v141, %v141
    %v537 = vmul.f32 %v142, %v142
    %v538 = vmul.f32 %v143, %v143
    %v539 = vmul.f32 %v144, %v144
    %v540 = vmul.f32 %v145, %v145
    %v541 = vmul.f32 %v146, %v146
    %v542 = vmul.f32 %v147, %v147
    %v543 = vmul.f32 %v148, %v148
    %v544 = vmul.f32 %v149, %v149
    %v545 = vmul.f32 %v150, %v150
    %v546 = vmul.f32 %v151, %v151
    %v547 = vmul.f32 %v152, %v152
    %v548 = vmul.f32 %v153, %v153
    %v549 = vmul.f32 %v154, %v154
    %v550 = vmul.f32 %v155, %v155
    %v551 = vmul.f32 %v156, %v156
    %v552 = vmul.f32 %v157, %v157
    %v553 = vmul.f32 %v158, %v158
    %v554 = vmul.f32 %v159, %v159
    %v555 = vmul.f32 %v160, %v160
    %v556 = vsel %vm162, %v428, 0.0
    %v557 = vsel %vm162, %v429, 0.0
    %v558 = vadd.f32 %v556, %v557
    %v559 = vsel %vm162, %v430, 0.0
    %v560 = vadd.f32 %v558, %v559
    %v561 = vsel %vm162, %v431, 0.0
    %v562 = vadd.f32 %v560, %v561
    %v563 = vsel %vm162, %v432, 0.0
    %v564 = vadd.f32 %v562, %v563
    %v565 = vsel %vm162, %v433, 0.0
    %v566 = vadd.f32 %v564, %v565
    %v567 = vsel %vm162, %v434, 0.0
    %v568 = vadd.f32 %v566, %v567
    %v569 = vsel %vm162, %v435, 0.0
    %v570 = vadd.f32 %v568, %v569
    %v571 = vsel %vm162, %v436, 0.0
    %v572 = vadd.f32 %v570, %v571
    %v573 = vsel %vm162, %v437, 0.0
    %v574 = vadd.f32 %v572, %v573
    %v575 = vsel %vm162, %v438, 0.0
    %v576 = vadd.f32 %v574, %v575
    %v577 = vsel %vm162, %v439, 0.0
    %v578 = vadd.f32 %v576, %v577
    %v579 = vsel %vm162, %v440, 0.0
    %v580 = vadd.f32 %v578, %v579
    %v581 = vsel %vm162, %v441, 0.0
    %v582 = vadd.f32 %v580, %v581
    %v583 = vsel %vm162, %v442, 0.0
    %v584 = vadd.f32 %v582, %v583
    %v585 = vsel %vm162, %v443, 0.0
    %v586 = vadd.f32 %v584, %v585
    %v587 = vsel %vm162, %v444, 0.0
    %v588 = vadd.f32 %v586, %v587
    %v589 = vsel %vm162, %v445, 0.0
    %v590 = vadd.f32 %v588, %v589
    %v591 = vsel %vm162, %v446, 0.0
    %v592 = vadd.f32 %v590, %v591
    %v593 = vsel %vm162, %v447, 0.0
    %v594 = vadd.f32 %v592, %v593
    %v595 = vsel %vm162, %v448, 0.0
    %v596 = vadd.f32 %v594, %v595
    %v597 = vsel %vm162, %v449, 0.0
    %v598 = vadd.f32 %v596, %v597
    %v599 = vsel %vm162, %v450, 0.0
    %v600 = vadd.f32 %v598, %v599
    %v601 = vsel %vm162, %v451, 0.0
    %v602 = vadd.f32 %v600, %v601
    %v603 = vsel %vm162, %v452, 0.0
    %v604 = vadd.f32 %v602, %v603
    %v605 = vsel %vm162, %v453, 0.0
    %v606 = vadd.f32 %v604, %v605
    %v607 = vsel %vm162, %v454, 0.0
    %v608 = vadd.f32 %v606, %v607
    %v609 = vsel %vm162, %v455, 0.0
    %v610 = vadd.f32 %v608, %v609
    %v611 = vsel %vm162, %v456, 0.0
    %v612 = vadd.f32 %v610, %v611
    %v613 = vsel %vm162, %v457, 0.0
    %v614 = vadd.f32 %v612, %v613
    %v615 = vsel %vm162, %v458, 0.0
    %v616 = vadd.f32 %v614, %v615
    %v617 = vsel %vm162, %v459, 0.0
    %v618 = vadd.f32 %v616, %v617
    %v619 = vsel %vm162, %v460, 0.0
    %v620 = vadd.f32 %v618, %v619
    %v621 = vsel %vm162, %v461, 0.0
    %v622 = vadd.f32 %v620, %v621
    %v623 = vsel %vm162, %v462, 0.0
    %v624 = vadd.f32 %v622, %v623
    %v625 = vsel %vm162, %v463, 0.0
    %v626 = vadd.f32 %v624, %v625
    %v627 = vsel %vm162, %v464, 0.0
    %v628 = vadd.f32 %v626, %v627
    %v629 = vsel %vm162, %v465, 0.0
    %v630 = vadd.f32 %v628, %v629
    %v631 = vsel %vm162, %v466, 0.0
    %v632 = vadd.f32 %v630, %v631
    %v633 = vsel %vm162, %v467, 0.0
    %v634 = vadd.f32 %v632, %v633
    %v635 = vsel %vm162, %v468, 0.0
    %v636 = vadd.f32 %v634, %v635
    %v637 = vsel %vm162, %v469, 0.0
    %v638 = vadd.f32 %v636, %v637
    %v639 = vsel %vm162, %v470, 0.0
    %v640 = vadd.f32 %v638, %v639
    %v641 = vsel %vm162, %v471, 0.0
    %v642 = vadd.f32 %v640, %v641
    %v643 = vsel %vm162, %v472, 0.0
    %v644 = vadd.f32 %v642, %v643
    %v645 = vsel %vm162, %v473, 0.0
    %v646 = vadd.f32 %v644, %v645
    %v647 = vsel %vm162, %v474, 0.0
    %v648 = vadd.f32 %v646, %v647
    %v649 = vsel %vm162, %v475, 0.0
    %v650 = vadd.f32 %v648, %v649
    %v651 = vsel %vm162, %v476, 0.0
    %v652 = vadd.f32 %v650, %v651
    %v653 = vsel %vm162, %v477, 0.0
    %v654 = vadd.f32 %v652, %v653
    %v655 = vsel %vm162, %v478, 0.0
    %v656 = vadd.f32 %v654, %v655
    %v657 = vsel %vm162, %v479, 0.0
    %v658 = vadd.f32 %v656, %v657
    %v659 = vsel %vm162, %v480, 0.0
    %v660 = vadd.f32 %v658, %v659
    %v661 = vsel %vm162, %v481, 0.0
    %v662 = vadd.f32 %v660, %v661
    %v663 = vsel %vm162, %v482, 0.0
    %v664 = vadd.f32 %v662, %v663
    %v665 = vsel %vm162, %v483, 0.0
    %v666 = vadd.f32 %v664, %v665
    %v667 = vsel %vm162, %v484, 0.0
    %v668 = vadd.f32 %v666, %v667
    %v669 = vsel %vm162, %v485, 0.0
    %v670 = vadd.f32 %v668, %v669
    %v671 = vsel %vm162, %v486, 0.0
    %v672 = vadd.f32 %v670, %v671
    %v673 = vsel %vm162, %v487, 0.0
    %v674 = vadd.f32 %v672, %v673
    %v675 = vsel %vm162, %v488, 0.0
    %v676 = vadd.f32 %v674, %v675
    %v677 = vsel %vm162, %v489, 0.0
    %v678 = vadd.f32 %v676, %v677
    %v679 = vsel %vm162, %v490, 0.0
    %v680 = vadd.f32 %v678, %v679
    %v681 = vsel %vm162, %v491, 0.0
    %v682 = vadd.f32 %v680, %v681
    %v683 = vsel %vm162, %v492, 0.0
    %v684 = vadd.f32 %v682, %v683
    %v685 = vsel %vm162, %v493, 0.0
    %v686 = vadd.f32 %v684, %v685
    %v687 = vsel %vm162, %v494, 0.0
    %v688 = vadd.f32 %v686, %v687
    %v689 = vsel %vm162, %v495, 0.0
    %v690 = vadd.f32 %v688, %v689
    %v691 = vsel %vm162, %v496, 0.0
    %v692 = vadd.f32 %v690, %v691
    %v693 = vsel %vm162, %v497, 0.0
    %v694 = vadd.f32 %v692, %v693
    %v695 = vsel %vm162, %v498, 0.0
    %v696 = vadd.f32 %v694, %v695
    %v697 = vsel %vm162, %v499, 0.0
    %v698 = vadd.f32 %v696, %v697
    %v699 = vsel %vm162, %v500, 0.0
    %v700 = vadd.f32 %v698, %v699
    %v701 = vsel %vm162, %v501, 0.0
    %v702 = vadd.f32 %v700, %v701
    %v703 = vsel %vm162, %v502, 0.0
    %v704 = vadd.f32 %v702, %v703
    %v705 = vsel %vm162, %v503, 0.0
    %v706 = vadd.f32 %v704, %v705
    %v707 = vsel %vm162, %v504, 0.0
    %v708 = vadd.f32 %v706, %v707
    %v709 = vsel %vm162, %v505, 0.0
    %v710 = vadd.f32 %v708, %v709
    %v711 = vsel %vm162, %v506, 0.0
    %v712 = vadd.f32 %v710, %v711
    %v713 = vsel %vm162, %v507, 0.0
    %v714 = vadd.f32 %v712, %v713
    %v715 = vsel %vm162, %v508, 0.0
    %v716 = vadd.f32 %v714, %v715
    %v717 = vsel %vm162, %v509, 0.0
    %v718 = vadd.f32 %v716, %v717
    %v719 = vsel %vm162, %v510, 0.0
    %v720 = vadd.f32 %v718, %v719
    %v721 = vsel %vm162, %v511, 0.0
    %v722 = vadd.f32 %v720, %v721
    %v723 = vsel %vm162, %v512, 0.0
    %v724 = vadd.f32 %v722, %v723
    %v725 = vsel %vm162, %v513, 0.0
    %v726 = vadd.f32 %v724, %v725
    %v727 = vsel %vm162, %v514, 0.0
    %v728 = vadd.f32 %v726, %v727
    %v729 = vsel %vm162, %v515, 0.0
    %v730 = vadd.f32 %v728, %v729
    %v731 = vsel %vm162, %v516, 0.0
    %v732 = vadd.f32 %v730, %v731
    %v733 = vsel %vm162, %v517, 0.0
    %v734 = vadd.f32 %v732, %v733
    %v735 = vsel %vm162, %v518, 0.0
    %v736 = vadd.f32 %v734, %v735
    %v737 = vsel %vm162, %v519, 0.0
    %v738 = vadd.f32 %v736, %v737
    %v739 = vsel %vm162, %v520, 0.0
    %v740 = vadd.f32 %v738, %v739
    %v741 = vsel %vm162, %v521, 0.0
    %v742 = vadd.f32 %v740, %v741
    %v743 = vsel %vm162, %v522, 0.0
    %v744 = vadd.f32 %v742, %v743
    %v745 = vsel %vm162, %v523, 0.0
    %v746 = vadd.f32 %v744, %v745
    %v747 = vsel %vm162, %v524, 0.0
    %v748 = vadd.f32 %v746, %v747
    %v749 = vsel %vm162, %v525, 0.0
    %v750 = vadd.f32 %v748, %v749
    %v751 = vsel %vm162, %v526, 0.0
    %v752 = vadd.f32 %v750, %v751
    %v753 = vsel %vm162, %v527, 0.0
    %v754 = vadd.f32 %v752, %v753
    %v755 = vsel %vm162, %v528, 0.0
    %v756 = vadd.f32 %v754, %v755
    %v757 = vsel %vm162, %v529, 0.0
    %v758 = vadd.f32 %v756, %v757
    %v759 = vsel %vm162, %v530, 0.0
    %v760 = vadd.f32 %v758, %v759
    %v761 = vsel %vm162, %v531, 0.0
    %v762 = vadd.f32 %v760, %v761
    %v763 = vsel %vm162, %v532, 0.0
    %v764 = vadd.f32 %v762, %v763
    %v765 = vsel %vm162, %v533, 0.0
    %v766 = vadd.f32 %v764, %v765
    %v767 = vsel %vm162, %v534, 0.0
    %v768 = vadd.f32 %v766, %v767
    %v769 = vsel %vm162, %v535, 0.0
    %v770 = vadd.f32 %v768, %v769
    %v771 = vsel %vm162, %v536, 0.0
    %v772 = vadd.f32 %v770, %v771
    %v773 = vsel %vm162, %v537, 0.0
    %v774 = vadd.f32 %v772, %v773
    %v775 = vsel %vm162, %v538, 0.0
    %v776 = vadd.f32 %v774, %v775
    %v777 = vsel %vm162, %v539, 0.0
    %v778 = vadd.f32 %v776, %v777
    %v779 = vsel %vm162, %v540, 0.0
    %v780 = vadd.f32 %v778, %v779
    %v781 = vsel %vm162, %v541, 0.0
    %v782 = vadd.f32 %v780, %v781
    %v783 = vsel %vm162, %v542, 0.0
    %v784 = vadd.f32 %v782, %v783
    %v785 = vsel %vm162, %v543, 0.0
    %v786 = vadd.f32 %v784, %v785
    %v787 = vsel %vm162, %v544, 0.0
    %v788 = vadd.f32 %v786, %v787
    %v789 = vsel %vm162, %v545, 0.0
    %v790 = vadd.f32 %v788, %v789
    %v791 = vsel %vm162, %v546, 0.0
    %v792 = vadd.f32 %v790, %v791
    %v793 = vsel %vm162, %v547, 0.0
    %v794 = vadd.f32 %v792, %v793
    %v795 = vsel %vm162, %v548, 0.0
    %v796 = vadd.f32 %v794, %v795
    %v797 = vsel %vm162, %v549, 0.0
    %v798 = vadd.f32 %v796, %v797
    %v799 = vsel %vm162, %v550, 0.0
    %v800 = vadd.f32 %v798, %v799
    %v801 = vsel %vm162, %v551, 0.0
    %v802 = vadd.f32 %v800, %v801
    %v803 = vsel %vm162, %v552, 0.0
    %v804 = vadd.f32 %v802, %v803
    %v805 = vsel %vm162, %v553, 0.0
    %v806 = vadd.f32 %v804, %v805
    %v807 = vsel %vm162, %v554, 0.0
    %v808 = vadd.f32 %v806, %v807
    %v809 = vsel %vm162, %v555, 0.0
    %v810 = vadd.f32 %v808, %v809
    %v811 = vrot.slane %v810, 4
    %v812 = vadd.f32 %v810, %v811
    %v813 = vrot.slane %v812, 2
    %v814 = vadd.f32 %v812, %v813
    %v815 = vrot.slane %v814, 1
    %v816 = vadd.f32 %v814, %v815
    %v817 = vadd.f32 %v427, %v816
    %818 = vst.msk [vmem:[#allocation6] sm:$0x1] %vm425, %v817
    // Predicated region
    $region14: #{tpu_custom_call.1} parent=1 // pred_check
      _
    $region15: #{tpu_custom_call.1} parent=1 // pred_check_branch
      %820 = sbr.rel (0) target = $region17
    $region16: #{tpu_custom_call.1} parent=1 // pred_region
      %s822 = ssub.s32 16, 16
      %823 = vsyncadd [#allocation4], %s822
      %s825 = sshll.u32 [#allocation5], 4
      %s826 = int_to_ptr.vmem [resolvable:$true] %s825
      %828 = dma.vmem_to_hbm [thread:$0]  %s826, 16, %s1, [#allocation4]
    $region17: #{tpu_custom_call.1} parent=1 // pred_fallthru
      _
    // Predicated region
    $region18: #{tpu_custom_call.1} parent=1 // pred_check
      _
    $region19: #{tpu_custom_call.1} parent=1 // pred_check_branch
      %830 = sbr.rel (0) target = $region21
    $region20: #{tpu_custom_call.1} parent=1 // pred_region
      %s832 = ssub.s32 16, 16
      %833 = vsyncadd [#allocation7], %s832
      %s835 = sshll.u32 [#allocation6], 4
      %s836 = int_to_ptr.vmem [resolvable:$true] %s835
      %838 = dma.vmem_to_hbm [thread:$0]  %s836, 16, %s2, [#allocation7]
    $region21: #{tpu_custom_call.1} parent=1 // pred_fallthru
      _
    // Predicated region
    $region22: #{tpu_custom_call.1} parent=1 // pred_check
      _
    $region23: #{tpu_custom_call.1} parent=1 // pred_check_branch
      %840 = sbr.rel (0) target = $region25
    $region24: #{tpu_custom_call.1} parent=1 // pred_region
      %841 = dma.done [#allocation4], 16
    $region25: #{tpu_custom_call.1} parent=1 // pred_fallthru
      _
    // Predicated region
    $region26: #{tpu_custom_call.1} parent=1 // pred_check
      _
    $region27: #{tpu_custom_call.1} parent=1 // pred_check_branch
      %843 = sbr.rel (0) target = $region29
    $region28: #{tpu_custom_call.1} parent=1 // pred_region
      %844 = dma.done [#allocation7], 16
    $region29: #{tpu_custom_call.1} parent=1 // pred_fallthru
      _
    %845 = vsyncpa [#allocation3], 1
    %846 = vsyncpa [#allocation4], 1
    %847 = vsyncpa [#allocation7], 1

</llo_original>
